<compile_context>
chip_gen: v5e
topology: v5e:2x2
jax: 0.10.0
libtpu: 0.0.40
codegen_flags: <defaults>
</compile_context>

<pallas_src>
import functools
import math

import jax
import jax.numpy as jnp
from jax.experimental import pallas as pl
from jax.experimental.pallas import tpu as pltpu


def _qkv_proj_kernel(x_ref, w_ref, b_ref, q_ref, k_ref, v_ref, *, d_head):
    """Fused (block_s, D) x (D, 3*d_head) projection for the current head."""
    # x_ref: (block_s, D); w_ref: (1, D, 3*dh); b_ref: (1, 1, 3*dh)
    qkv = jnp.dot(x_ref[...], w_ref[0],
                  preferred_element_type=jnp.float32) + b_ref[0]   # (block_s, 3*dh)
    q_ref[0] = qkv[:, :d_head].astype(q_ref.dtype)
    k_ref[0] = qkv[:, d_head:2 * d_head].astype(k_ref.dtype)
    v_ref[0] = qkv[:, 2 * d_head:].astype(v_ref.dtype)


def _flash_attn_kernel(q_ref, k_ref, v_ref, o_ref, m_sc, l_sc, acc_sc,
                       *, scale, num_heads, d_head):
    ki = pl.program_id(1)

    @pl.when(ki == 0)
    def _():
        m_sc[...] = jnp.full(m_sc.shape, -jnp.inf, dtype=m_sc.dtype)
        l_sc[...] = jnp.zeros(l_sc.shape, dtype=l_sc.dtype)
        acc_sc[...] = jnp.zeros(acc_sc.shape, dtype=acc_sc.dtype)

    q = q_ref[...]                                    # (H, bq, dh)
    k = k_ref[...]                                    # (H, bk, dh)
    v = v_ref[...]                                    # (H, bk, dh)

    # Batched-over-heads QK^T: contracts d_head, no explicit K transpose.
    s = jnp.einsum('hqd,hkd->hqk', q, k,
                   preferred_element_type=jnp.float32) * scale    # (H, bq, bk)

    # Online (flash) softmax update, f32 statistics.
    m_prev = m_sc[...]
    m_new = jnp.maximum(m_prev, jnp.max(s, axis=-1, keepdims=True))
    alpha = jnp.exp(m_prev - m_new)
    p = jnp.exp(s - m_new)
    l_sc[...] = alpha * l_sc[...] + jnp.sum(p, axis=-1, keepdims=True)
    acc_sc[...] = alpha * acc_sc[...] + jnp.einsum(
        'hqk,hkd->hqd', p.astype(v.dtype), v,
        preferred_element_type=jnp.float32)                        # (H, bq, dh)
    m_sc[...] = m_new

    @pl.when(ki == pl.num_programs(1) - 1)
    def _():
        # Deferred normalization: scale the (H, bq, dh) accumulator (factor
        # S/dh less VALU work than scaling p).  Reciprocal uses the EUP slot.
        inv = pl.reciprocal(l_sc[...], approx=True)                # (H, bq, 1)
        out = acc_sc[...] * inv
        # Write each head's slab straight into the lane-dense (bq, H*dh)
        # output block (unmasked stores whenever d_head % 128 == 0).
        for h in range(num_heads):
            o_ref[:, h * d_head:(h + 1) * d_head] = out[h].astype(o_ref.dtype)


def masked_multi_head_attention(x, wq, wk, wv, bq, bk, bv,
                                *, block_q=None, block_k=None, block_s=None):
    """x: (S, d_model); wq/wk/wv: (H, d_model, d_head); bq/bk/bv: (H, 1, d_head).

    Returns (S, H * d_head): per-head attention outputs concatenated on features.
    """
    S, D = x.shape
    H, _, dh = wq.shape
    HD = H * dh

    # Tile sizes: multiples of (8, 128) at production scale, full extent here.
    if block_s is None:
        block_s = min(S, 256)
    if block_q is None:
        block_q = min(S, 128)
    if block_k is None:
        block_k = min(S, 512)
    assert S % block_s == 0 and S % block_q == 0 and S % block_k == 0, (
        S, block_s, block_q, block_k)

    # Fused per-head [Wq | Wk | Wv] and [bq | 0 | bv]; bk dropped (softmax is
    # shift-invariant in the key bias -> exactly equivalent output).
    w_qkv = jnp.concatenate([wq, wk, wv], axis=-1)                    # (H, D, 3*dh)
    b_qkv = jnp.concatenate([bq, jnp.zeros_like(bk), bv], axis=-1)    # (H, 1, 3*dh)

    def cparams(dims):
        return pltpu.CompilerParams(dimension_semantics=dims,
                                    vmem_limit_bytes=32 * 1024 * 1024)

    # ---- Kernel 1: QKV projection, computed exactly once (hoisted out of the
    # attention grid), emitted in batched-heads (H, S, dh) layout. ----
    qkv_shape = jax.ShapeDtypeStruct((H, S, dh), x.dtype)
    q, k, v = pl.pallas_call(
        functools.partial(_qkv_proj_kernel, d_head=dh),
        out_shape=(qkv_shape, qkv_shape, qkv_shape),
        grid_spec=pltpu.PrefetchScalarGridSpec(
            num_scalar_prefetch=0,
            grid=(S // block_s, H),
            in_specs=[
                # x row-tile stays resident across the inner head sweep.
                pl.BlockSpec((block_s, D), lambda si, h: (si, 0)),
                pl.BlockSpec((1, D, 3 * dh), lambda si, h: (h, 0, 0)),
                pl.BlockSpec((1, 1, 3 * dh), lambda si, h: (h, 0, 0)),
            ],
            out_specs=(
                pl.BlockSpec((1, block_s, dh), lambda si, h: (h, si, 0)),
                pl.BlockSpec((1, block_s, dh), lambda si, h: (h, si, 0)),
                pl.BlockSpec((1, block_s, dh), lambda si, h: (h, si, 0)),
            ),
        ),
        compiler_params=cparams(("parallel", "parallel")),
    )(x, w_qkv, b_qkv)

    # ---- Kernel 2: flash attention over the precomputed Q/K/V.  KV streamed
    # tile-by-tile (pipelined), heads batched, online softmax in scratch. ----
    out = pl.pallas_call(
        functools.partial(_flash_attn_kernel, scale=1.0 / math.sqrt(dh),
                          num_heads=H, d_head=dh),
        out_shape=jax.ShapeDtypeStruct((S, HD), x.dtype),
        grid_spec=pltpu.PrefetchScalarGridSpec(
            num_scalar_prefetch=0,
            grid=(S // block_q, S // block_k),
            in_specs=[
                pl.BlockSpec((H, block_q, dh), lambda qi, ki: (0, qi, 0)),
                pl.BlockSpec((H, block_k, dh), lambda qi, ki: (0, ki, 0)),
                pl.BlockSpec((H, block_k, dh), lambda qi, ki: (0, ki, 0)),
            ],
            out_specs=pl.BlockSpec((block_q, HD), lambda qi, ki: (qi, 0)),
            scratch_shapes=[
                pltpu.VMEM((H, block_q, 1), jnp.float32),    # running max m
                pltpu.VMEM((H, block_q, 1), jnp.float32),    # running sum l
                pltpu.VMEM((H, block_q, dh), jnp.float32),   # unnormalized acc
            ],
        ),
        compiler_params=cparams(("parallel", "arbitrary")),
    )(q, k, v)
    return out


def _reference(x, wq, wk, wv, bq, bk, bv):
    """Pure-JAX reference (intended semantics) for the correctness check."""
    H, D, dh = wq.shape
    outs = []
    for h in range(H):
        q = x @ wq[h] + bq[h]
        k = x @ wk[h] + bk[h]
        v = x @ wv[h] + bv[h]
        s = (q @ k.T) / jnp.sqrt(jnp.float32(dh))
        p = jax.nn.softmax(s, axis=-1)
        outs.append(p @ v)
    return jnp.concatenate(outs, axis=-1)


if __name__ == "__main__":
    d_model = 32
    num_heads = 4
    d_head = d_model // num_heads        # 8
    seq = 8

    key = jax.random.PRNGKey(0)
    kx, kwq, kwk, kwv, kbq, kbk, kbv = jax.random.split(key, 7)

    x = jax.random.normal(kx, (seq, d_model), dtype=jnp.float32)

    # nn.Linear-style init: uniform(-1/sqrt(fan_in), 1/sqrt(fan_in)), deterministic.
    bound = 1.0 / jnp.sqrt(jnp.float32(d_model))
    wq = jax.random.uniform(kwq, (num_heads, d_model, d_head), jnp.float32, -bound, bound)
    wk = jax.random.uniform(kwk, (num_heads, d_model, d_head), jnp.float32, -bound, bound)
    wv = jax.random.uniform(kwv, (num_heads, d_model, d_head), jnp.float32, -bound, bound)
    bq = jax.random.uniform(kbq, (num_heads, 1, d_head), jnp.float32, -bound, bound)
    bk = jax.random.uniform(kbk, (num_heads, 1, d_head), jnp.float32, -bound, bound)
    bv = jax.random.uniform(kbv, (num_heads, 1, d_head), jnp.float32, -bound, bound)

    out = masked_multi_head_attention(x, wq, wk, wv, bq, bk, bv)
    out = jax.block_until_ready(out)

    ref = _reference(x, wq, wk, wv, bq, bk, bv)
    assert out.shape == (seq, d_model), out.shape
    # tolerance relaxed slightly vs f32-exact because of the EUP approximate
    # reciprocal in the softmax denominator (values are O(1)).
    err = float(jnp.max(jnp.abs(out - ref)))
    assert err < 5e-3, err

    print("KERNEL_OK")
</pallas_src>

<mosaic_0001>
module attributes {stable_mosaic.version = 11 : i64} {
  func.func @_qkv_proj_kernel(%arg0: i32, %arg1: i32, %arg2: memref<8x32xf32, #tpu.memory_space<vmem>>, %arg3: memref<1x32x24xf32, #tpu.memory_space<vmem>>, %arg4: memref<1x1x24xf32, #tpu.memory_space<vmem>>, %arg5: memref<1x8x8xf32, #tpu.memory_space<vmem>>, %arg6: memref<1x8x8xf32, #tpu.memory_space<vmem>>, %arg7: memref<1x8x8xf32, #tpu.memory_space<vmem>>) attributes {dimension_semantics = [#tpu.dimension_semantics<parallel>, #tpu.dimension_semantics<parallel>], iteration_bounds = array<i64: 1, 4>, scalar_prefetch = 0 : i64, scratch_operands = 0 : i64, tpu.core_type = #tpu.core_type<tc>, window_params = [{transform_indices = @transform_0, window_bounds = array<i64: 8, 32>}, {transform_indices = @transform_1, window_bounds = array<i64: 1, 32, 24>}, {transform_indices = @transform_2, window_bounds = array<i64: 1, 1, 24>}, {transform_indices = @transform_3, window_bounds = array<i64: 1, 8, 8>}, {transform_indices = @transform_4, window_bounds = array<i64: 1, 8, 8>}, {transform_indices = @transform_5, window_bounds = array<i64: 1, 8, 8>}]} {
    %c0 = arith.constant 0 : index
    %c0_0 = arith.constant 0 : index
    %0 = vector.load %arg2[%c0, %c0_0] : memref<8x32xf32, #tpu.memory_space<vmem>>, vector<8x32xf32>
    %c0_1 = arith.constant 0 : index
    %c0_2 = arith.constant 0 : index
    %c0_3 = arith.constant 0 : index
    %1 = vector.load %arg3[%c0_1, %c0_2, %c0_3] : memref<1x32x24xf32, #tpu.memory_space<vmem>>, vector<1x32x24xf32>
    %2 = vector.shape_cast %1 : vector<1x32x24xf32> to vector<32x24xf32>
    %cst = arith.constant dense<0.000000e+00> : vector<8x24xf32>
    %3 = tpu.matmul %0, %2, %cst {dimension_numbers = #tpu.dot_dimension_numbers<[1], [0], [0], [1], [0, 0, 1, 1], [], []>} : vector<8x32xf32>, vector<32x24xf32>, vector<8x24xf32> -> vector<8x24xf32>
    %c0_4 = arith.constant 0 : index
    %c0_5 = arith.constant 0 : index
    %c0_6 = arith.constant 0 : index
    %4 = vector.load %arg4[%c0_4, %c0_5, %c0_6] : memref<1x1x24xf32, #tpu.memory_space<vmem>>, vector<1x1x24xf32>
    %5 = vector.shape_cast %4 : vector<1x1x24xf32> to vector<1x24xf32>
    %6 = vector.broadcast %5 : vector<1x24xf32> to vector<8x24xf32>
    %7 = arith.addf %3, %6 : vector<8x24xf32>
    %8 = vector.extract_strided_slice %7 {offsets = [0, 0], sizes = [8, 8], strides = [1, 1]} : vector<8x24xf32> to vector<8x8xf32>
    %c0_7 = arith.constant 0 : index
    %c0_8 = arith.constant 0 : index
    %c0_9 = arith.constant 0 : index
    %9 = vector.load %arg5[%c0_7, %c0_8, %c0_9] : memref<1x8x8xf32, #tpu.memory_space<vmem>>, vector<1x8x8xf32>
    %10 = vector.shape_cast %9 : vector<1x8x8xf32> to vector<8x8xf32>
    %11 = vector.shape_cast %8 : vector<8x8xf32> to vector<1x8x8xf32>
    tpu.vector_store %arg5[%c0_7, %c0_8, %c0_9], %11 {strides = array<i32>} : memref<1x8x8xf32, #tpu.memory_space<vmem>>, vector<1x8x8xf32>,
    %12 = vector.extract_strided_slice %7 {offsets = [0, 8], sizes = [8, 8], strides = [1, 1]} : vector<8x24xf32> to vector<8x8xf32>
    %c0_10 = arith.constant 0 : index
    %c0_11 = arith.constant 0 : index
    %c0_12 = arith.constant 0 : index
    %13 = vector.load %arg6[%c0_10, %c0_11, %c0_12] : memref<1x8x8xf32, #tpu.memory_space<vmem>>, vector<1x8x8xf32>
    %14 = vector.shape_cast %13 : vector<1x8x8xf32> to vector<8x8xf32>
    %15 = vector.shape_cast %12 : vector<8x8xf32> to vector<1x8x8xf32>
    tpu.vector_store %arg6[%c0_10, %c0_11, %c0_12], %15 {strides = array<i32>} : memref<1x8x8xf32, #tpu.memory_space<vmem>>, vector<1x8x8xf32>,
    %16 = vector.extract_strided_slice %7 {offsets = [0, 16], sizes = [8, 8], strides = [1, 1]} : vector<8x24xf32> to vector<8x8xf32>
    %c0_13 = arith.constant 0 : index
    %c0_14 = arith.constant 0 : index
    %c0_15 = arith.constant 0 : index
    %17 = vector.load %arg7[%c0_13, %c0_14, %c0_15] : memref<1x8x8xf32, #tpu.memory_space<vmem>>, vector<1x8x8xf32>
    %18 = vector.shape_cast %17 : vector<1x8x8xf32> to vector<8x8xf32>
    %19 = vector.shape_cast %16 : vector<8x8xf32> to vector<1x8x8xf32>
    tpu.vector_store %arg7[%c0_13, %c0_14, %c0_15], %19 {strides = array<i32>} : memref<1x8x8xf32, #tpu.memory_space<vmem>>, vector<1x8x8xf32>,
    return
  }
  func.func @transform_0(%arg0: i32, %arg1: i32) -> (i32, i32) {
    %c0_i32 = arith.constant 0 : i32
    %c0_i32_0 = arith.constant 0 : i32
    return %arg0, %c0_i32 : i32, i32
  }
  func.func @transform_1(%arg0: i32, %arg1: i32) -> (i32, i32, i32) {
    %c0_i32 = arith.constant 0 : i32
    %c0_i32_0 = arith.constant 0 : i32
    %c0_i32_1 = arith.constant 0 : i32
    return %arg1, %c0_i32, %c0_i32_0 : i32, i32, i32
  }
  func.func @transform_2(%arg0: i32, %arg1: i32) -> (i32, i32, i32) {
    %c0_i32 = arith.constant 0 : i32
    %c0_i32_0 = arith.constant 0 : i32
    %c0_i32_1 = arith.constant 0 : i32
    return %arg1, %c0_i32, %c0_i32_0 : i32, i32, i32
  }
  func.func @transform_3(%arg0: i32, %arg1: i32) -> (i32, i32, i32) {
    %c0_i32 = arith.constant 0 : i32
    %c0_i32_0 = arith.constant 0 : i32
    return %arg1, %arg0, %c0_i32 : i32, i32, i32
  }
  func.func @transform_4(%arg0: i32, %arg1: i32) -> (i32, i32, i32) {
    %c0_i32 = arith.constant 0 : i32
    %c0_i32_0 = arith.constant 0 : i32
    return %arg1, %arg0, %c0_i32 : i32, i32, i32
  }
  func.func @transform_5(%arg0: i32, %arg1: i32) -> (i32, i32, i32) {
    %c0_i32 = arith.constant 0 : i32
    %c0_i32_0 = arith.constant 0 : i32
    return %arg1, %arg0, %c0_i32 : i32, i32, i32
  }
}

</mosaic_0001>

<llo_original>
// kernel: tpu_custom_call.1
$region0: #{tpu_custom_call.1}
  #allocation0 [shape = 'u32[]', space=smem, size = 0x4, offset = 0x4, fixed_abs, tag = 'smem constant byte address 0x4 - core index']
  #allocation1 [shape = 'u32[72,128]{1,0:T(1,128)}', space=vmem, size = 0x9000, scoped, tag = 'internal scratch']
  %s0 = inlined_call_operand.vmem [shape: f32[8,32], index: 0, kind: input, shape index: {}]
  %s1 = inlined_call_operand.vmem [shape: f32[4,32,24], index: 1, kind: input, shape index: {}]
  %s2 = inlined_call_operand.vmem [shape: f32[4,1,24], index: 2, kind: input, shape index: {}]
  %s3 = inlined_call_operand.hbm [shape: f32[4,8,8], index: 3, kind: output, shape index: {0}]
  %s4 = inlined_call_operand.hbm [shape: f32[4,8,8], index: 4, kind: output, shape index: {1}]
  %s5 = inlined_call_operand.hbm [shape: f32[4,8,8], index: 5, kind: output, shape index: {2}]
  %6 = xla_tuple %s3, %s4, %s5
  %s7 = sld [smem:[#allocation0]]
  $region61: #{tpu_custom_call.1} parent=0
    _
  %s9 = ssub.s32 1, %s7
  %s10 = scalar_select 0, %s9, %s7
  $region1: #{tpu_custom_call.1} parent=0
    #allocation2 [shape = 'u8[8192]{0}', space=vmem, size = 0x2000, scoped, tag = 'output window, operand 0']
    #allocation3 [shape = 's32[2]{0}', space=sflag, size = 0x8, scoped, tag = 'scoped memory for tpu_custom_call.1']
    #allocation4 [shape = 'u8[8192]{0}', space=vmem, size = 0x2000, scoped, tag = 'output window, operand 1']
    #allocation5 [shape = 's32[2]{0}', space=sflag, size = 0x8, scoped, tag = 'scoped memory for tpu_custom_call.1']
    #allocation6 [shape = 'u8[8192]{0}', space=vmem, size = 0x2000, scoped, tag = 'output window, operand 2']
    %11 = vsyncpa [#allocation3], 0
    %s12 = scalar_lea.sflag [#allocation3], 1
    %13 = vsyncpa %s12, 0
    %14 = vsyncpa [#allocation5], 0
    %s15 = scalar_lea.sflag [#allocation5], 1
    %16 = vsyncpa %s15, 0
    loop: start=0, step=1, limit=6
    $region2: #{tpu_custom_call.1} parent=1 // loop_pre_header
      _
    $region3: #{tpu_custom_call.1} parent=1 // loop_header
      %s18 = sphi 0, %s22
      %p19 = scmp.ge.s32.totalorder %s18, 6
      %s25 = sphi 0, %s37
      %s26 = sphi 0, %s33
      %s27 = sphi 0, %s25
      %s28 = sphi 0, %s26
      %s29 = sphi 0, %s27
      %s30 = sphi 0, %s28
      %s40 = sphi 0, %s42
      %s43 = sphi 0, %s40
      %s44 = sphi 0, %s43
      %s60 = sphi 0, %s44
      %s66 = sphi 0, %s68
      %s69 = sphi 0, %s66
      %s70 = sphi 0, %s69
      %s86 = sphi 0, %s70
      %s92 = sphi 0, %s94
      %s95 = sphi 0, %s92
      %s96 = sphi 0, %s95
      %s112 = sphi 0, %s96
      %s120 = sphi 0, %s122
      %s123 = sphi 0, %s120
      %s124 = sphi 0, %s123
      %s140 = sphi 0, %s124
      %s148 = sphi 0, %s150
      %s151 = sphi 0, %s148
      %s152 = sphi 0, %s151
      %s168 = sphi 0, %s152
      %s176 = sphi 0, %s178
      %s179 = sphi 0, %s176
      %s180 = sphi 0, %s179
      %s196 = sphi 0, %s180
    $region4: #{tpu_custom_call.1} parent=1 // loop_header_branch
      %21 = sbr.rel (%p19) target = $region8
    $region5: #{tpu_custom_call.1} parent=1 // loop_body
      %s23 = ssub.s32 %s18, 1
      %s24 = ssub.s32 %s18, 2
      %s31 = sadd.s32 1, %s26
      %p32 = scmp.ge.s32.totalorder %s31, 4
      %s33 = scalar_select %p32, 0, %s31
      %s34 = sadd.s32 1, %s25
      %s35 = scalar_select %p32, %s34, %s25
      %p36 = scmp.ge.s32.totalorder %s35, 1
      %s37 = scalar_select %p36, 0, %s35
      %s38 = ssub.s32 %s25, %s37
      %p39 = scmp.eq.s32.totalorder %s38, 0
      %s41 = sadd.s32 %s40, 1
      %s42 = scalar_select %p39, %s40, %s41
      %p45 = pneg %p39
      %p46 = scmp.eq.s32.totalorder %s18, 3
      %p47 = por %p45, %p46
      %p48 = scmp.ne.s32.totalorder %s40, %s43
      %p49 = scmp.eq.s32.totalorder %s18, 0
      %p50 = por %p48, %p49
      %p51 = scmp.ne.s32.totalorder %s40, %s43
      %p52 = scmp.eq.s32.totalorder %s23, 3
      %p53 = por %p51, %p52
      %p54 = scmp.ne.s32.totalorder %s43, %s44
      %p55 = scmp.eq.s32.totalorder %s23, 0
      %p56 = por %p54, %p55
      %p57 = scmp.ne.s32.totalorder %s43, %s44
      %p58 = scmp.eq.s32.totalorder %s24, 3
      %p59 = por %p57, %p58
      %p61 = scmp.ne.s32.totalorder %s44, %s60
      %p62 = scmp.eq.s32.totalorder %s24, 0
      %p63 = por %p61, %p62
      %s64 = ssub.s32 %s26, %s33
      %p65 = scmp.eq.s32.totalorder %s64, 0
      %s67 = sadd.s32 %s66, 1
      %s68 = scalar_select %p65, %s66, %s67
      %p71 = pneg %p65
      %p72 = scmp.eq.s32.totalorder %s18, 3
      %p73 = por %p71, %p72
      %p74 = scmp.ne.s32.totalorder %s66, %s69
      %p75 = scmp.eq.s32.totalorder %s18, 0
      %p76 = por %p74, %p75
      %p77 = scmp.ne.s32.totalorder %s66, %s69
      %p78 = scmp.eq.s32.totalorder %s23, 3
      %p79 = por %p77, %p78
      %p80 = scmp.ne.s32.totalorder %s69, %s70
      %p81 = scmp.eq.s32.totalorder %s23, 0
      %p82 = por %p80, %p81
      %p83 = scmp.ne.s32.totalorder %s69, %s70
      %p84 = scmp.eq.s32.totalorder %s24, 3
      %p85 = por %p83, %p84
      %p87 = scmp.ne.s32.totalorder %s70, %s86
      %p88 = scmp.eq.s32.totalorder %s24, 0
      %p89 = por %p87, %p88
      %s90 = ssub.s32 %s26, %s33
      %p91 = scmp.eq.s32.totalorder %s90, 0
      %s93 = sadd.s32 %s92, 1
      %s94 = scalar_select %p91, %s92, %s93
      %p97 = pneg %p91
      %p98 = scmp.eq.s32.totalorder %s18, 3
      %p99 = por %p97, %p98
      %p100 = scmp.ne.s32.totalorder %s92, %s95
      %p101 = scmp.eq.s32.totalorder %s18, 0
      %p102 = por %p100, %p101
      %p103 = scmp.ne.s32.totalorder %s92, %s95
      %p104 = scmp.eq.s32.totalorder %s23, 3
      %p105 = por %p103, %p104
      %p106 = scmp.ne.s32.totalorder %s95, %s96
      %p107 = scmp.eq.s32.totalorder %s23, 0
      %p108 = por %p106, %p107
      %p109 = scmp.ne.s32.totalorder %s95, %s96
      %p110 = scmp.eq.s32.totalorder %s24, 3
      %p111 = por %p109, %p110
      %p113 = scmp.ne.s32.totalorder %s96, %s112
      %p114 = scmp.eq.s32.totalorder %s24, 0
      %p115 = por %p113, %p114
      %s116 = ssub.s32 %s26, %s33
      %s117 = ssub.s32 %s25, %s37
      %s118 = sor.u32 %s116, %s117
      %p119 = scmp.eq.s32.totalorder %s118, 0
      %s121 = sadd.s32 %s120, 1
      %s122 = scalar_select %p119, %s120, %s121
      %p125 = pneg %p119
      %p126 = scmp.eq.s32.totalorder %s18, 3
      %p127 = por %p125, %p126
      %p128 = scmp.ne.s32.totalorder %s120, %s123
      %p129 = scmp.eq.s32.totalorder %s18, 0
      %p130 = por %p128, %p129
      %p131 = scmp.ne.s32.totalorder %s120, %s123
      %p132 = scmp.eq.s32.totalorder %s23, 3
      %p133 = por %p131, %p132
      %p134 = scmp.ne.s32.totalorder %s123, %s124
      %p135 = scmp.eq.s32.totalorder %s23, 0
      %p136 = por %p134, %p135
      %p137 = scmp.ne.s32.totalorder %s123, %s124
      %p138 = scmp.eq.s32.totalorder %s24, 3
      %p139 = por %p137, %p138
      %p141 = scmp.ne.s32.totalorder %s124, %s140
      %p142 = scmp.eq.s32.totalorder %s24, 0
      %p143 = por %p141, %p142
      %s144 = ssub.s32 %s26, %s33
      %s145 = ssub.s32 %s25, %s37
      %s146 = sor.u32 %s144, %s145
      %p147 = scmp.eq.s32.totalorder %s146, 0
      %s149 = sadd.s32 %s148, 1
      %s150 = scalar_select %p147, %s148, %s149
      %p153 = pneg %p147
      %p154 = scmp.eq.s32.totalorder %s18, 3
      %p155 = por %p153, %p154
      %p156 = scmp.ne.s32.totalorder %s148, %s151
      %p157 = scmp.eq.s32.totalorder %s18, 0
      %p158 = por %p156, %p157
      %p159 = scmp.ne.s32.totalorder %s148, %s151
      %p160 = scmp.eq.s32.totalorder %s23, 3
      %p161 = por %p159, %p160
      %p162 = scmp.ne.s32.totalorder %s151, %s152
      %p163 = scmp.eq.s32.totalorder %s23, 0
      %p164 = por %p162, %p163
      %p165 = scmp.ne.s32.totalorder %s151, %s152
      %p166 = scmp.eq.s32.totalorder %s24, 3
      %p167 = por %p165, %p166
      %p169 = scmp.ne.s32.totalorder %s152, %s168
      %p170 = scmp.eq.s32.totalorder %s24, 0
      %p171 = por %p169, %p170
      %s172 = ssub.s32 %s26, %s33
      %s173 = ssub.s32 %s25, %s37
      %s174 = sor.u32 %s172, %s173
      %p175 = scmp.eq.s32.totalorder %s174, 0
      %s177 = sadd.s32 %s176, 1
      %s178 = scalar_select %p175, %s176, %s177
      %p181 = pneg %p175
      %p182 = scmp.eq.s32.totalorder %s18, 3
      %p183 = por %p181, %p182
      %p184 = scmp.ne.s32.totalorder %s176, %s179
      %p185 = scmp.eq.s32.totalorder %s18, 0
      %p186 = por %p184, %p185
      %p187 = scmp.ne.s32.totalorder %s176, %s179
      %p188 = scmp.eq.s32.totalorder %s23, 3
      %p189 = por %p187, %p188
      %p190 = scmp.ne.s32.totalorder %s179, %s180
      %p191 = scmp.eq.s32.totalorder %s23, 0
      %p192 = por %p190, %p191
      %p193 = scmp.ne.s32.totalorder %s179, %s180
      %p194 = scmp.eq.s32.totalorder %s24, 3
      %p195 = por %p193, %p194
      %p197 = scmp.ne.s32.totalorder %s180, %s196
      %p198 = scmp.eq.s32.totalorder %s24, 0
      %p199 = por %p197, %p198
      %p200 = scmp.le.s32.totalorder 1, %s18
      %p201 = scmp.lt.s32.totalorder %s18, 5
      %p202 = pnand %p200, %p201
      %p203 = pneg %p202
      // Predicated region
      $region9: #{tpu_custom_call.1} parent=5 // pred_check
        _
      $region10: #{tpu_custom_call.1} parent=5 // pred_check_branch
        %205 = sbr.rel (%p202) target = $region12
      $region11: #{tpu_custom_call.1} parent=5 // pred_region
        %s206 = ssub.s32 %s18, 1
        // Predicated region
        $region13: #{tpu_custom_call.1} parent=11 // pred_check
          %p207 = pneg %p56
        $region14: #{tpu_custom_call.1} parent=11 // pred_check_branch
          %209 = sbr.rel (%p207) target = $region16
        $region15: #{tpu_custom_call.1} parent=11 // pred_region
          %p210 = scmp.lt.s32.totalorder %s27, 0
          %s211 = scalar_select %p210, %s27, 0
          %s212 = smul.addr %s211, 8
          %s213 = scalar_lea.vmem %s0, %s212
        $region16: #{tpu_custom_call.1} parent=11 // pred_fallthru
          _
      $region12: #{tpu_custom_call.1} parent=5 // pred_fallthru
        _
      %p214 = scmp.lt.s32.totalorder %s18, 4
      // Predicated region
      $region17: #{tpu_custom_call.1} parent=5 // pred_check
        %p215 = pneg %p214
      $region18: #{tpu_custom_call.1} parent=5 // pred_check_branch
        %217 = sbr.rel (%p215) target = $region20
      $region19: #{tpu_custom_call.1} parent=5 // pred_region
        // Predicated region
        $region21: #{tpu_custom_call.1} parent=19 // pred_check
          %p218 = pneg %p76
        $region22: #{tpu_custom_call.1} parent=19 // pred_check_branch
          %220 = sbr.rel (%p218) target = $region24
        $region23: #{tpu_custom_call.1} parent=19 // pred_region
          %p221 = scmp.lt.s32.totalorder %s26, 3
          %s222 = scalar_select %p221, %s26, 3
          %s223 = smul.addr %s222, 4
          %s224 = smul.addr %s223, 8
          %s225 = scalar_lea.vmem %s1, %s224
        $region24: #{tpu_custom_call.1} parent=19 // pred_fallthru
          _
        // Predicated region
        $region25: #{tpu_custom_call.1} parent=19 // pred_check
          %p226 = pneg %p102
        $region26: #{tpu_custom_call.1} parent=19 // pred_check_branch
          %228 = sbr.rel (%p226) target = $region28
        $region27: #{tpu_custom_call.1} parent=19 // pred_region
          %p229 = scmp.lt.s32.totalorder %s26, 3
          %s230 = scalar_select %p229, %s26, 3
          %s231 = scalar_lea.vmem %s2, %s230
        $region28: #{tpu_custom_call.1} parent=19 // pred_fallthru
          _
      $region20: #{tpu_custom_call.1} parent=5 // pred_fallthru
        _
      %p232 = scmp.le.s32.totalorder 1, %s18
      %p233 = scmp.lt.s32.totalorder %s18, 5
      %p234 = pnand %p232, %p233
      %p235 = pneg %p234
      // Predicated region
      $region29: #{tpu_custom_call.1} parent=5 // pred_check
        _
      $region30: #{tpu_custom_call.1} parent=5 // pred_check_branch
        %237 = sbr.rel (%p234) target = $region32
      $region31: #{tpu_custom_call.1} parent=5 // pred_region
        %s238 = ssub.s32 %s18, 1
        %p239 = scmp.lt.s32.totalorder %s27, 0
        %s240 = scalar_select %p239, %s27, 0
        %s241 = smul.addr %s240, 8
        %s242 = scalar_lea.vmem %s0, %s241
        %p243 = pneg %p56
        %p244 = pneg %p53
        %p245 = scmp.lt.s32.totalorder %s28, 3
        %s246 = scalar_select %p245, %s28, 3
        %s247 = smul.addr %s246, 4
        %s248 = smul.addr %s247, 8
        %s249 = scalar_lea.vmem %s1, %s248
        %p250 = pneg %p82
        %p251 = pneg %p79
        %p252 = scmp.lt.s32.totalorder %s28, 3
        %s253 = scalar_select %p252, %s28, 3
        %s254 = scalar_lea.vmem %s2, %s253
        %p255 = pneg %p108
        %p256 = pneg %p105
        %p257 = pneg %p136
        %p258 = pneg %p133
        %s259 = sand.u32 %s123, 1
        %s260 = scalar_lea.sflag [#allocation3], %s259
        %s261 = sand.u32 %s123, 1
        %s262 = smul.addr %s261, 8
        %s263 = scalar_lea.vmem [#allocation2], %s262
        %p264 = pneg %p164
        %p265 = pneg %p161
        %s266 = sand.u32 %s23, 1
        %s267 = scalar_lea.sflag [#allocation5], %s266
        %s268 = sand.u32 %s151, 1
        %s269 = smul.addr %s268, 8
        %s270 = scalar_lea.vmem [#allocation4], %s269
        %p271 = pneg %p192
        %p272 = pneg %p189
        %s273 = sand.u32 %s23, 1
        %s274 = scalar_lea.sflag [#allocation5], %s273
        %s275 = sand.u32 %s179, 1
        %s276 = smul.addr %s275, 8
        %s277 = scalar_lea.vmem [#allocation6], %s276
        %p278 = scmp.lt.s32.totalorder %s27, 0
        %s279 = scalar_select %p278, %s27, 0
        %s280 = smul.addr %s279, 8
        %s281 = scalar_lea.vmem %s0, %s280
        %p282 = scmp.lt.s32.totalorder %s28, 3
        %s283 = scalar_select %p282, %s28, 3
        %s284 = smul.addr %s283, 4
        %s285 = smul.addr %s284, 8
        %s286 = scalar_lea.vmem %s1, %s285
        %p287 = scmp.lt.s32.totalorder %s28, 3
        %s288 = scalar_select %p287, %s28, 3
        %s289 = scalar_lea.vmem %s2, %s288
        %v290 = vld [vmem:[%s281] sm:$0xff]
        %v291 = vld [vmem:[%s286] sm:$0xff]
        %v292 = vld [vmem:[%s286 + $0x8] sm:$0xff]
        %v293 = vld [vmem:[%s286 + $0x10] sm:$0xff]
        %v294 = vld [vmem:[%s286 + $0x18] sm:$0xff]
        %v295 = vld [vmem:[%s289] sm:$0x1]
        %v297 = vperm.slane %v295, 0
        %vm299 = vcmask 261120
        %v301 = vsel %vm299, %v290, 0
        %303 = vmatpush.msra.mxu0 0.0
        %304 = vmatpush.msra.mxu0 0.0
        %305 = vmatpush.msra.mxu0 0.0
        %306 = vmatpush.msra.mxu0 0.0
        %307 = vmatpush.msra.mxu0 0.0
        %308 = vmatpush.msra.mxu0 0.0
        %309 = vmatpush.msra.mxu0 0.0
        %310 = vmatpush.msra.mxu0 0.0
        %311 = vmatpush.msra.mxu0 0.0
        %312 = vmatpush.msra.mxu0 0.0
        %313 = vmatpush.msra.mxu0 0.0
        %314 = vmatpush.msra.mxu0 0.0
        %315 = vmatpush.msra.mxu0 %v294
        %316 = vmatpush.msra.mxu0 %v293
        %317 = vmatpush.msra.mxu0 %v292
        %318 = vmatpush.msra.mxu0 %v291
        %319 = vmatmul.f32.gmra.mxu0 %v301
        %v320 = vpop.f32.mrf.mxu0
        %v321 = vadd.f32 %v297, %v320
        %322 = vdwg.mxu0
        %vm323 = vcmask 64512
        %324 = vst.msk [vmem:[%s263] sm:$0xff] %vm323, %v321
        %326 = vrot.lane.b32.xlu0 %v321, 120
        %v327 = vpop.permute.xlu0 %326
        %329 = vst.msk [vmem:[%s270] sm:$0xff] %vm323, %v327
        %330 = vrot.lane.b32.xlu0 %v321, 112
        %v331 = vpop.permute.xlu0 %330
        %333 = vst.msk [vmem:[%s277] sm:$0xff] %vm323, %v331
        %s334 = sand.u32 %s123, 1
        %s335 = scalar_lea.sflag [#allocation3], %s334
        %s336 = sand.u32 %s123, 1
        %s337 = smul.addr %s336, 8
        %s338 = scalar_lea.vmem [#allocation2], %s337
        %s339 = sand.u32 %s23, 1
        %s340 = scalar_lea.sflag [#allocation5], %s339
        %s341 = sand.u32 %s151, 1
        %s342 = smul.addr %s341, 8
        %s343 = scalar_lea.vmem [#allocation4], %s342
        %s344 = sand.u32 %s23, 1
        %s345 = scalar_lea.sflag [#allocation5], %s344
        %s346 = sand.u32 %s179, 1
        %s347 = smul.addr %s346, 8
        %s348 = scalar_lea.vmem [#allocation6], %s347
        // Predicated region
        $region33: #{tpu_custom_call.1} parent=31 // pred_check
          %p349 = pneg %p133
        $region34: #{tpu_custom_call.1} parent=31 // pred_check_branch
          %351 = sbr.rel (%p349) target = $region36
        $region35: #{tpu_custom_call.1} parent=31 // pred_region
          %353 = vsyncadd %s335, 0
          %s354 = sadd.s32 %s27, %s28
          %s355 = smul.addr %s354, 8
          %s356 = scalar_lea.hbm %s3, %s355
          %s358 = sshll.u32 %s338, 4
          %s359 = int_to_ptr.vmem [resolvable:$true] %s358
          %s360 = sshll.u32 %s356, 4
          %s361 = int_to_ptr.hbm [resolvable:$true] %s360
          %363 = dma.vmem_to_hbm [thread:$0]  %s359, 128, %s361, %s335
        $region36: #{tpu_custom_call.1} parent=31 // pred_fallthru
          _
        // Predicated region
        $region37: #{tpu_custom_call.1} parent=31 // pred_check
          %p364 = pneg %p161
        $region38: #{tpu_custom_call.1} parent=31 // pred_check_branch
          %366 = sbr.rel (%p364) target = $region40
        $region39: #{tpu_custom_call.1} parent=31 // pred_region
          %368 = vsyncadd %s340, 0
          %s369 = sadd.s32 %s27, %s28
          %s370 = smul.addr %s369, 8
          %s371 = scalar_lea.hbm %s4, %s370
          %s373 = sshll.u32 %s343, 4
          %s374 = int_to_ptr.vmem [resolvable:$true] %s373
          %s375 = sshll.u32 %s371, 4
          %s376 = int_to_ptr.hbm [resolvable:$true] %s375
          %378 = dma.vmem_to_hbm [thread:$0]  %s374, 128, %s376, %s340
        $region40: #{tpu_custom_call.1} parent=31 // pred_fallthru
          _
        // Predicated region
        $region41: #{tpu_custom_call.1} parent=31 // pred_check
          %p379 = pneg %p189
        $region42: #{tpu_custom_call.1} parent=31 // pred_check_branch
          %381 = sbr.rel (%p379) target = $region44
        $region43: #{tpu_custom_call.1} parent=31 // pred_region
          %383 = vsyncadd %s345, 0
          %s384 = sadd.s32 %s27, %s28
          %s385 = smul.addr %s384, 8
          %s386 = scalar_lea.hbm %s5, %s385
          %s388 = sshll.u32 %s348, 4
          %s389 = int_to_ptr.vmem [resolvable:$true] %s388
          %s390 = sshll.u32 %s386, 4
          %s391 = int_to_ptr.hbm [resolvable:$true] %s390
          %393 = dma.vmem_to_hbm [thread:$0]  %s389, 128, %s391, %s345
        $region44: #{tpu_custom_call.1} parent=31 // pred_fallthru
          _
      $region32: #{tpu_custom_call.1} parent=5 // pred_fallthru
        _
      %p394 = scmp.le.s32.totalorder 2, %s18
      // Predicated region
      $region45: #{tpu_custom_call.1} parent=5 // pred_check
        %p395 = pneg %p394
      $region46: #{tpu_custom_call.1} parent=5 // pred_check_branch
        %397 = sbr.rel (%p395) target = $region48
      $region47: #{tpu_custom_call.1} parent=5 // pred_region
        %s398 = ssub.s32 %s18, 2
        // Predicated region
        $region49: #{tpu_custom_call.1} parent=47 // pred_check
          %p399 = pneg %p139
        $region50: #{tpu_custom_call.1} parent=47 // pred_check_branch
          %401 = sbr.rel (%p399) target = $region52
        $region51: #{tpu_custom_call.1} parent=47 // pred_region
          %s402 = sand.u32 %s124, 1
          %s403 = scalar_lea.sflag [#allocation3], %s402
          %s404 = sand.u32 %s124, 1
          %s405 = smul.addr %s404, 8
          %s406 = scalar_lea.vmem [#allocation2], %s405
          %408 = dma.done %s403, 128
        $region52: #{tpu_custom_call.1} parent=47 // pred_fallthru
          _
        // Predicated region
        $region53: #{tpu_custom_call.1} parent=47 // pred_check
          %p409 = pneg %p167
        $region54: #{tpu_custom_call.1} parent=47 // pred_check_branch
          %411 = sbr.rel (%p409) target = $region56
        $region55: #{tpu_custom_call.1} parent=47 // pred_region
          %s412 = sand.u32 %s24, 1
          %s413 = scalar_lea.sflag [#allocation5], %s412
          %s414 = sand.u32 %s152, 1
          %s415 = smul.addr %s414, 8
          %s416 = scalar_lea.vmem [#allocation4], %s415
          %418 = dma.done %s413, 128
        $region56: #{tpu_custom_call.1} parent=47 // pred_fallthru
          _
        // Predicated region
        $region57: #{tpu_custom_call.1} parent=47 // pred_check
          %p419 = pneg %p195
        $region58: #{tpu_custom_call.1} parent=47 // pred_check_branch
          %421 = sbr.rel (%p419) target = $region60
        $region59: #{tpu_custom_call.1} parent=47 // pred_region
          %s422 = sand.u32 %s24, 1
          %s423 = scalar_lea.sflag [#allocation5], %s422
          %s424 = sand.u32 %s180, 1
          %s425 = smul.addr %s424, 8
          %s426 = scalar_lea.vmem [#allocation6], %s425
          %428 = dma.done %s423, 128
        $region60: #{tpu_custom_call.1} parent=47 // pred_fallthru
          _
      $region48: #{tpu_custom_call.1} parent=5 // pred_fallthru
        _
    $region6: #{tpu_custom_call.1} parent=1 // loop_footer
      %s22 = sadd.s32 1, %s18
    $region7: #{tpu_custom_call.1} parent=1 // loop_footer_branch
      %17 = sbr.rel target = $region3
    $region8: #{tpu_custom_call.1} parent=1 // loop_exit
      _
    %429 = vsyncpa [#allocation3], 1
    %s430 = scalar_lea.sflag [#allocation3], 1
    %431 = vsyncpa %s430, 1
    %432 = vsyncpa [#allocation5], 1
    %s433 = scalar_lea.sflag [#allocation5], 1
    %434 = vsyncpa %s433, 1

</llo_original>
